<compile_context>
chip_gen: v6e
topology: v6e:2x2x1
jax: 0.10.0
libtpu: 0.0.40
codegen_flags: <defaults>
</compile_context>

<pallas_src>
import functools

import jax
import jax.numpy as jnp
from jax.experimental import pallas as pl
from jax.experimental.pallas import tpu as pltpu


def _round_up(x, m):
    return ((x + m - 1) // m) * m


def _divnorm_kernel(x_ref, kmat_ref, out_ref, *, beta, k, tn, hwp):
    # x_ref:    (tm, HWp) f32   -- full flattened-spatial row block
    # kmat_ref: (HWp, tn) bf16  -- column block of the (scaled) correlation matrix
    # out_ref:  (tm, tn)  f32
    j = pl.program_id(1)

    x = x_ref[...]                                   # (tm, HWp) f32
    sq = x * x                                       # f32, exact epilogue numerator
    lhs = sq.astype(jnp.bfloat16)                    # MXU-native operand dtype
    conv = jnp.dot(lhs, kmat_ref[...],
                   preferred_element_type=jnp.float32)   # (tm, tn) f32 accumulation

    # alpha / (xy_lamb+1e-6)^2 is already folded into kmat.
    base = conv + k
    if beta == 0.25:                                 # module default: sqrt chain, no log/exp
        divi = jnp.sqrt(jnp.sqrt(base))
    elif beta == 0.5:
        divi = jnp.sqrt(base)
    elif beta == 1.0:
        divi = base
    else:
        # General pow (assumes base > 0, as in the PyTorch module with k > 0).
        divi = jnp.exp(beta * jnp.log(base))

    if tn == hwp:
        sq_j = sq                                    # single column block: reuse
    else:
        col0 = pl.multiple_of(j * tn, 128)
        xj = x_ref[:, pl.ds(col0, tn)]
        sq_j = xj * xj

    out_ref[...] = sq_j * pl.reciprocal(divi + 1e-6, approx=True)


def _build_spatial_kernel_matrix(H, W, xy_lamb, scale, HWp):
    # Dense (HWp, HWp) matrix realizing the zero-padded spatial correlation with
    # the exponential-distance kernel; radius = H//2 (matches xy_neighbors//2).
    # `scale` = alpha / (xy_lamb + 1e-6)^2 is folded in here (constant folding).
    R = H // 2
    xs = jnp.arange(H)
    ys = jnp.arange(W)
    dx = xs[None, None, :, None] - xs[:, None, None, None]   # (H,1,H,1)
    dy = ys[None, None, None, :] - ys[None, :, None, None]   # (1,W,1,W)
    dist = jnp.sqrt((dx * dx + dy * dy).astype(jnp.float32))
    mask = (jnp.abs(dx) <= R) & (jnp.abs(dy) <= R)
    kmat = jnp.where(mask, jnp.exp(-dist / xy_lamb) * scale, 0.0)
    kmat = kmat.reshape(H * W, H * W)
    if HWp != H * W:
        pad = HWp - H * W
        kmat = jnp.pad(kmat, ((0, pad), (0, pad)))
    return kmat.astype(jnp.bfloat16)


def _choose_tiles(BC, HW):
    HWp = _round_up(HW, 128)                 # lane-dense output columns
    BCp = _round_up(BC, 8)                   # sublane alignment
    # Column tile: keep kmat block resident when small; 512-wide (256-aligned)
    # column streaming when the dense matrix gets large (v7x VMEM constraint).
    tn = HWp if HWp <= 1024 else 512
    # Row tile: big enough to pipeline well, capped so the x row block stays ~<=4MiB.
    tm = min(512, BCp)
    max_tm = max(8, ((4 << 20) // (HWp * 4)) // 8 * 8)
    tm = min(tm, max_tm)
    BCp = _round_up(BCp, tm)
    return BCp, HWp, tm, tn


def spatial_only_divisive_norm(x, xy_lamb=10.0, alpha=1.0, beta=0.25, k=1.0):
    B, C, H, W = x.shape
    assert H == W, "module assumes square spatial dims (xy_neighbors from dim 2)"
    BC, HW = B * C, H * W
    BCp, HWp, tm, tn = _choose_tiles(BC, HW)

    x_flat = x.reshape(BC, HW).astype(jnp.float32)
    if BCp != BC or HWp != HW:
        x_flat = jnp.pad(x_flat, ((0, BCp - BC), (0, HWp - HW)))

    scale = float(alpha) / ((float(xy_lamb) + 1e-6) ** 2)
    kmat = _build_spatial_kernel_matrix(H, W, float(xy_lamb), scale, HWp)

    grid = (BCp // tm, HWp // tn)

    # VMEM budget: double-buffered blocks + in-kernel temporaries + headroom.
    est = (2 * (tm * HWp * 4 + HWp * tn * 2 + tm * tn * 4)
           + tm * HWp * 4 + 3 * tm * tn * 4
           + (2 << 20))
    vmem_limit = int(min(max(est, 8 << 20), 64 << 20))

    kernel = functools.partial(_divnorm_kernel,
                               beta=float(beta), k=float(k), tn=tn, hwp=HWp)

    out_flat = pl.pallas_call(
        kernel,
        out_shape=jax.ShapeDtypeStruct((BCp, HWp), jnp.float32),
        grid_spec=pltpu.PrefetchScalarGridSpec(
            num_scalar_prefetch=0,
            grid=grid,
            in_specs=[
                pl.BlockSpec((tm, HWp), lambda i, j: (i, 0)),   # x rows
                pl.BlockSpec((HWp, tn), lambda i, j: (0, j)),   # kmat columns (resident if tn==HWp)
            ],
            out_specs=pl.BlockSpec((tm, tn), lambda i, j: (i, j)),
        ),
        compiler_params=pltpu.CompilerParams(
            dimension_semantics=("parallel", "parallel"),
            vmem_limit_bytes=vmem_limit,
        ),
    )(x_flat, kmat)

    return out_flat[:BC, :HW].reshape(B, C, H, W)


def _reference(x, xy_lamb=10.0, alpha=1.0, beta=0.25, k=1.0):
    # Independent pure-JAX reference (depthwise zero-padded correlation).
    B, C, H, W = x.shape
    R = H // 2
    d = jnp.arange(-R, R + 1)
    dist = jnp.sqrt((d[:, None] ** 2 + d[None, :] ** 2).astype(jnp.float32))
    K = jnp.exp(-dist / xy_lamb)
    sq = x * x
    conv = jax.lax.conv_general_dilated(
        sq, jnp.tile(K[None, None], (C, 1, 1, 1)),
        window_strides=(1, 1), padding=((R, R), (R, R)),
        dimension_numbers=("NCHW", "OIHW", "NCHW"),
        feature_group_count=C)
    divi = conv / (xy_lamb + 1e-6) / (xy_lamb + 1e-6)
    divi = (divi * alpha + k) ** beta
    return sq / (divi + 1e-6)


if __name__ == "__main__":
    key = jax.random.PRNGKey(0)
    x = jax.random.normal(key, (2, 4, 16, 16), dtype=jnp.float32)

    # Deterministic parameter init = module __init__ defaults.
    xy_lamb, alpha, beta, k = 10.0, 1.0, 0.25, 1.0

    out = spatial_only_divisive_norm(x, xy_lamb, alpha, beta, k)
    out = jax.block_until_ready(out)

    ref = _reference(x, xy_lamb, alpha, beta, k)
    assert out.shape == (2, 4, 16, 16)
    assert jnp.allclose(out, ref, rtol=1e-2, atol=1e-2), "mismatch vs reference"

    print("KERNEL_OK")
</pallas_src>

<mosaic_0001>
module attributes {stable_mosaic.version = 11 : i64} {
  func.func @_divnorm_kernel(%arg0: i32, %arg1: i32, %arg2: memref<8x256xf32, #tpu.memory_space<vmem>>, %arg3: memref<256x256xbf16, #tpu.memory_space<vmem>>, %arg4: memref<8x256xf32, #tpu.memory_space<vmem>>) attributes {dimension_semantics = [#tpu.dimension_semantics<parallel>, #tpu.dimension_semantics<parallel>], iteration_bounds = array<i64: 1, 1>, scalar_prefetch = 0 : i64, scratch_operands = 0 : i64, tpu.core_type = #tpu.core_type<tc>, window_params = [{transform_indices = @transform_0, window_bounds = array<i64: 8, 256>}, {transform_indices = @transform_1, window_bounds = array<i64: 256, 256>}, {transform_indices = @transform_2, window_bounds = array<i64: 8, 256>}]} {
    %c0 = arith.constant 0 : index
    %c0_0 = arith.constant 0 : index
    %0 = vector.load %arg2[%c0, %c0_0] : memref<8x256xf32, #tpu.memory_space<vmem>>, vector<8x256xf32>
    %1 = arith.mulf %0, %0 : vector<8x256xf32>
    %2 = arith.truncf %1 : vector<8x256xf32> to vector<8x256xbf16>
    %c0_1 = arith.constant 0 : index
    %c0_2 = arith.constant 0 : index
    %3 = vector.load %arg3[%c0_1, %c0_2] : memref<256x256xbf16, #tpu.memory_space<vmem>>, vector<256x256xbf16>
    %cst = arith.constant dense<0.000000e+00> : vector<8x256xf32>
    %4 = tpu.matmul %2, %3, %cst {dimension_numbers = #tpu.dot_dimension_numbers<[1], [0], [0], [1], [0, 0, 1, 1], [], []>} : vector<8x256xbf16>, vector<256x256xbf16>, vector<8x256xf32> -> vector<8x256xf32>
    %cst_3 = arith.constant 1.000000e+00 : f32
    %5 = vector.broadcast %cst_3 : f32 to vector<8x256xf32>
    %6 = arith.addf %4, %5 : vector<8x256xf32>
    %7 = math.sqrt %6 : vector<8x256xf32>
    %8 = math.sqrt %7 : vector<8x256xf32>
    %cst_4 = arith.constant 9.99999997E-7 : f32
    %9 = vector.broadcast %cst_4 : f32 to vector<8x256xf32>
    %10 = arith.addf %8, %9 : vector<8x256xf32>
    %11 = tpu.reciprocal %10 {approx = true} : vector<8x256xf32> -> vector<8x256xf32>
    %12 = arith.mulf %1, %11 : vector<8x256xf32>
    %c0_5 = arith.constant 0 : index
    %c0_6 = arith.constant 0 : index
    %13 = vector.load %arg4[%c0_5, %c0_6] : memref<8x256xf32, #tpu.memory_space<vmem>>, vector<8x256xf32>
    tpu.vector_store %arg4[%c0_5, %c0_6], %12 {strides = array<i32>} : memref<8x256xf32, #tpu.memory_space<vmem>>, vector<8x256xf32>,
    return
  }
  func.func @transform_0(%arg0: i32, %arg1: i32) -> (i32, i32) {
    %c0_i32 = arith.constant 0 : i32
    %c0_i32_0 = arith.constant 0 : i32
    return %arg0, %c0_i32 : i32, i32
  }
  func.func @transform_1(%arg0: i32, %arg1: i32) -> (i32, i32) {
    %c0_i32 = arith.constant 0 : i32
    %c0_i32_0 = arith.constant 0 : i32
    return %c0_i32, %arg1 : i32, i32
  }
  func.func @transform_2(%arg0: i32, %arg1: i32) -> (i32, i32) {
    %c0_i32 = arith.constant 0 : i32
    return %arg0, %arg1 : i32, i32
  }
}

</mosaic_0001>

<llo_original>
// kernel: tpu_custom_call.1
$region0: #{tpu_custom_call.1}
  #allocation0 [shape = 'u32[]', space=smem, size = 0x4, offset = 0x4, fixed_abs, tag = 'smem constant byte address 0x4 - core index']
  #allocation1 [shape = 'u32[144,128]{1,0:T(1,128)}', space=vmem, size = 0x12000, scoped, tag = 'internal scratch']
  %s0 = inlined_call_operand.hbm [shape: f32[8,256], index: 0, kind: input, shape index: {}]
  %s1 = inlined_call_operand.hbm [shape: bf16[256,256], index: 1, kind: input, shape index: {}]
  %s2 = inlined_call_operand.hbm [shape: f32[8,256], index: 2, kind: output, shape index: {}]
  %s3 = sld [smem:[#allocation0]]
  $region26: #{tpu_custom_call.1} parent=0
    _
  %s5 = ssub.s32 1, %s3
  %s6 = scalar_select 0, %s5, %s3
  $region1: #{tpu_custom_call.1} parent=0
    #allocation2 [shape = 'u8[8192]{0}', space=vmem, size = 0x2000, scoped, tag = 'input window, operand 0, single buffered']
    #allocation3 [shape = 's32[1]{0}', space=sflag, size = 0x4, scoped, tag = 'scoped memory for tpu_custom_call.1']
    #allocation4 [shape = 's32[1]{0}', space=sflag, size = 0x4, scoped, tag = 'scoped memory for tpu_custom_call.1']
    #allocation5 [shape = 'u8[131072]{0}', space=vmem, size = 0x20000, scoped, tag = 'input window, operand 1, single buffered']
    #allocation6 [shape = 's32[1]{0}', space=sflag, size = 0x4, scoped, tag = 'scoped memory for tpu_custom_call.1']
    #allocation7 [shape = 'u8[8192]{0}', space=vmem, size = 0x2000, scoped, tag = 'output window, operand 0, single buffered']
    %7 = vsyncpa [#allocation3], 0
    %8 = vsyncpa [#allocation6], 0
    %9 = vsyncpa [#allocation4], 0
    // Predicated region
    $region2: #{tpu_custom_call.1} parent=1 // pred_check
      _
    $region3: #{tpu_custom_call.1} parent=1 // pred_check_branch
      %11 = sbr.rel (0) target = $region5
    $region4: #{tpu_custom_call.1} parent=1 // pred_region
      %s13 = ssub.s32 256, 256
      %14 = vsyncadd [#allocation3], %s13
      %s16 = sshll.u32 [#allocation2], 4
      %s17 = int_to_ptr.vmem [resolvable:$true] %s16
      %19 = dma.hbm_to_vmem [thread:$0]  %s0, 256, %s17, [#allocation3]
    $region5: #{tpu_custom_call.1} parent=1 // pred_fallthru
      _
    // Predicated region
    $region6: #{tpu_custom_call.1} parent=1 // pred_check
      _
    $region7: #{tpu_custom_call.1} parent=1 // pred_check_branch
      %21 = sbr.rel (0) target = $region9
    $region8: #{tpu_custom_call.1} parent=1 // pred_region
      %s23 = ssub.s32 4096, 4096
      %24 = vsyncadd [#allocation6], %s23
      %s25 = sshll.u32 [#allocation5], 4
      %s26 = int_to_ptr.vmem [resolvable:$true] %s25
      %31 = dma.hbm_to_vmem [thread:$0]  %s1, 4096, %s26, [#allocation6], 128, 128, 8
    $region9: #{tpu_custom_call.1} parent=1 // pred_fallthru
      _
    // Predicated region
    $region10: #{tpu_custom_call.1} parent=1 // pred_check
      _
    $region11: #{tpu_custom_call.1} parent=1 // pred_check_branch
      %33 = sbr.rel (0) target = $region13
    $region12: #{tpu_custom_call.1} parent=1 // pred_region
      %34 = dma.done [#allocation3], 256
    $region13: #{tpu_custom_call.1} parent=1 // pred_fallthru
      _
    // Predicated region
    $region14: #{tpu_custom_call.1} parent=1 // pred_check
      _
    $region15: #{tpu_custom_call.1} parent=1 // pred_check_branch
      %36 = sbr.rel (0) target = $region17
    $region16: #{tpu_custom_call.1} parent=1 // pred_region
      %37 = dma.done [#allocation6], 4096
    $region17: #{tpu_custom_call.1} parent=1 // pred_fallthru
      _
    %v38 = vld [vmem:[#allocation2] sm:$0xff]
    %v39 = vld [vmem:[#allocation2 + $0x8] sm:$0xff]
    %v40 = vmul.f32 %v38, %v38
    %v41 = vmul.f32 %v39, %v39
    %v42 = vpack.c.bf16 %v40, %v40
    %v43 = vpack.c.bf16 %v41, %v41
    %v44 = vld [vmem:[#allocation5] sm:$0xff]
    %v45 = vld [vmem:[#allocation5 + $0x8] sm:$0xff]
    %v46 = vld [vmem:[#allocation5 + $0x10] sm:$0xff]
    %v47 = vld [vmem:[#allocation5 + $0x18] sm:$0xff]
    %v48 = vld [vmem:[#allocation5 + $0x20] sm:$0xff]
    %v49 = vld [vmem:[#allocation5 + $0x28] sm:$0xff]
    %v50 = vld [vmem:[#allocation5 + $0x30] sm:$0xff]
    %v51 = vld [vmem:[#allocation5 + $0x38] sm:$0xff]
    %v52 = vld [vmem:[#allocation5 + $0x40] sm:$0xff]
    %v53 = vld [vmem:[#allocation5 + $0x48] sm:$0xff]
    %v54 = vld [vmem:[#allocation5 + $0x50] sm:$0xff]
    %v55 = vld [vmem:[#allocation5 + $0x58] sm:$0xff]
    %v56 = vld [vmem:[#allocation5 + $0x60] sm:$0xff]
    %v57 = vld [vmem:[#allocation5 + $0x68] sm:$0xff]
    %v58 = vld [vmem:[#allocation5 + $0x70] sm:$0xff]
    %v59 = vld [vmem:[#allocation5 + $0x78] sm:$0xff]
    %v60 = vld [vmem:[#allocation5 + $0x80] sm:$0xff]
    %v61 = vld [vmem:[#allocation5 + $0x88] sm:$0xff]
    %v62 = vld [vmem:[#allocation5 + $0x90] sm:$0xff]
    %v63 = vld [vmem:[#allocation5 + $0x98] sm:$0xff]
    %v64 = vld [vmem:[#allocation5 + $0xa0] sm:$0xff]
    %v65 = vld [vmem:[#allocation5 + $0xa8] sm:$0xff]
    %v66 = vld [vmem:[#allocation5 + $0xb0] sm:$0xff]
    %v67 = vld [vmem:[#allocation5 + $0xb8] sm:$0xff]
    %v68 = vld [vmem:[#allocation5 + $0xc0] sm:$0xff]
    %v69 = vld [vmem:[#allocation5 + $0xc8] sm:$0xff]
    %v70 = vld [vmem:[#allocation5 + $0xd0] sm:$0xff]
    %v71 = vld [vmem:[#allocation5 + $0xd8] sm:$0xff]
    %v72 = vld [vmem:[#allocation5 + $0xe0] sm:$0xff]
    %v73 = vld [vmem:[#allocation5 + $0xe8] sm:$0xff]
    %v74 = vld [vmem:[#allocation5 + $0xf0] sm:$0xff]
    %v75 = vld [vmem:[#allocation5 + $0xf8] sm:$0xff]
    %v108 = vunpack.c.l.b16 %v44
    %v109 = vunpack.c.h.b16 %v44
    %v110 = vunpack.c.l.b16 %v45
    %v111 = vunpack.c.h.b16 %v45
    %v112 = vunpack.c.l.b16 %v46
    %v113 = vunpack.c.h.b16 %v46
    %v114 = vunpack.c.l.b16 %v47
    %v115 = vunpack.c.h.b16 %v47
    %v116 = vunpack.c.l.b16 %v48
    %v117 = vunpack.c.h.b16 %v48
    %v118 = vunpack.c.l.b16 %v49
    %v119 = vunpack.c.h.b16 %v49
    %v120 = vunpack.c.l.b16 %v50
    %v121 = vunpack.c.h.b16 %v50
    %v122 = vunpack.c.l.b16 %v51
    %v123 = vunpack.c.h.b16 %v51
    %v124 = vunpack.c.l.b16 %v52
    %v125 = vunpack.c.h.b16 %v52
    %v126 = vunpack.c.l.b16 %v53
    %v127 = vunpack.c.h.b16 %v53
    %v128 = vunpack.c.l.b16 %v54
    %v129 = vunpack.c.h.b16 %v54
    %v130 = vunpack.c.l.b16 %v55
    %v131 = vunpack.c.h.b16 %v55
    %v132 = vunpack.c.l.b16 %v56
    %v133 = vunpack.c.h.b16 %v56
    %v134 = vunpack.c.l.b16 %v57
    %v135 = vunpack.c.h.b16 %v57
    %v136 = vunpack.c.l.b16 %v58
    %v137 = vunpack.c.h.b16 %v58
    %v138 = vunpack.c.l.b16 %v59
    %v139 = vunpack.c.h.b16 %v59
    %v140 = vunpack.c.l.b16 %v60
    %v141 = vunpack.c.h.b16 %v60
    %v142 = vunpack.c.l.b16 %v61
    %v143 = vunpack.c.h.b16 %v61
    %v144 = vunpack.c.l.b16 %v62
    %v145 = vunpack.c.h.b16 %v62
    %v146 = vunpack.c.l.b16 %v63
    %v147 = vunpack.c.h.b16 %v63
    %v148 = vunpack.c.l.b16 %v64
    %v149 = vunpack.c.h.b16 %v64
    %v150 = vunpack.c.l.b16 %v65
    %v151 = vunpack.c.h.b16 %v65
    %v152 = vunpack.c.l.b16 %v66
    %v153 = vunpack.c.h.b16 %v66
    %v154 = vunpack.c.l.b16 %v67
    %v155 = vunpack.c.h.b16 %v67
    %v156 = vunpack.c.l.b16 %v68
    %v157 = vunpack.c.h.b16 %v68
    %v158 = vunpack.c.l.b16 %v69
    %v159 = vunpack.c.h.b16 %v69
    %v160 = vunpack.c.l.b16 %v70
    %v161 = vunpack.c.h.b16 %v70
    %v162 = vunpack.c.l.b16 %v71
    %v163 = vunpack.c.h.b16 %v71
    %v164 = vunpack.c.l.b16 %v72
    %v165 = vunpack.c.h.b16 %v72
    %v166 = vunpack.c.l.b16 %v73
    %v167 = vunpack.c.h.b16 %v73
    %v168 = vunpack.c.l.b16 %v74
    %v169 = vunpack.c.h.b16 %v74
    %v170 = vunpack.c.l.b16 %v75
    %v171 = vunpack.c.h.b16 %v75
    %v172 = vpack.c.b16 %v110, %v108
    %v173 = vpack.c.b16 %v111, %v109
    %v174 = vpack.c.b16 %v114, %v112
    %v175 = vpack.c.b16 %v115, %v113
    %v176 = vpack.c.b16 %v118, %v116
    %v177 = vpack.c.b16 %v119, %v117
    %v178 = vpack.c.b16 %v122, %v120
    %v179 = vpack.c.b16 %v123, %v121
    %v180 = vpack.c.b16 %v126, %v124
    %v181 = vpack.c.b16 %v127, %v125
    %v182 = vpack.c.b16 %v130, %v128
    %v183 = vpack.c.b16 %v131, %v129
    %v184 = vpack.c.b16 %v134, %v132
    %v185 = vpack.c.b16 %v135, %v133
    %v186 = vpack.c.b16 %v138, %v136
    %v187 = vpack.c.b16 %v139, %v137
    %v188 = vpack.c.b16 %v142, %v140
    %v189 = vpack.c.b16 %v143, %v141
    %v190 = vpack.c.b16 %v146, %v144
    %v191 = vpack.c.b16 %v147, %v145
    %v192 = vpack.c.b16 %v150, %v148
    %v193 = vpack.c.b16 %v151, %v149
    %v194 = vpack.c.b16 %v154, %v152
    %v195 = vpack.c.b16 %v155, %v153
    %v196 = vpack.c.b16 %v158, %v156
    %v197 = vpack.c.b16 %v159, %v157
    %v198 = vpack.c.b16 %v162, %v160
    %v199 = vpack.c.b16 %v163, %v161
    %v200 = vpack.c.b16 %v166, %v164
    %v201 = vpack.c.b16 %v167, %v165
    %v202 = vpack.c.b16 %v170, %v168
    %v203 = vpack.c.b16 %v171, %v169
    %236 = vmatprep.subr.bf16.mxu0 %v187
    %237 = vmatpush1.bf16.msra.mxu0 %v186
    %238 = vmatprep.subr.bf16.mxu0 %v185
    %239 = vmatpush1.bf16.msra.mxu0 %v184
    %240 = vmatprep.subr.bf16.mxu0 %v183
    %241 = vmatpush1.bf16.msra.mxu0 %v182
    %242 = vmatprep.subr.bf16.mxu0 %v181
    %243 = vmatpush1.bf16.msra.mxu0 %v180
    %244 = vmatprep.subr.bf16.mxu0 %v179
    %245 = vmatpush1.bf16.msra.mxu0 %v178
    %246 = vmatprep.subr.bf16.mxu0 %v177
    %247 = vmatpush1.bf16.msra.mxu0 %v176
    %248 = vmatprep.subr.bf16.mxu0 %v175
    %249 = vmatpush1.bf16.msra.mxu0 %v174
    %250 = vmatprep.subr.bf16.mxu0 %v173
    %251 = vmatpush1.bf16.msra.mxu0 %v172
    %252 = vmatprep.subr.bf16.mxu0 %v203
    %253 = vmatpush2.bf16.msra.mxu0 %v202
    %254 = vmatprep.subr.bf16.mxu0 %v201
    %255 = vmatpush2.bf16.msra.mxu0 %v200
    %256 = vmatprep.subr.bf16.mxu0 %v199
    %257 = vmatpush2.bf16.msra.mxu0 %v198
    %258 = vmatprep.subr.bf16.mxu0 %v197
    %259 = vmatpush2.bf16.msra.mxu0 %v196
    %260 = vmatprep.subr.bf16.mxu0 %v195
    %261 = vmatpush2.bf16.msra.mxu0 %v194
    %262 = vmatprep.subr.bf16.mxu0 %v193
    %263 = vmatpush2.bf16.msra.mxu0 %v192
    %264 = vmatprep.subr.bf16.mxu0 %v191
    %265 = vmatpush2.bf16.msra.mxu0 %v190
    %266 = vmatprep.subr.bf16.mxu0 %v189
    %267 = vmatpush2.bf16.msra.mxu0 %v188
    %268 = vmatprep.mubr.bf16.mxu0 %v43
    %269 = vmatmul.mubr.bf16.gmra.mxu0 %v42
    %v270 = vpop.f32.mrf.mxu0
    %v271 = vadd.f32 1.0, %v270
    %v272 = vpop.f32.mrf.mxu0
    %v273 = vadd.f32 1.0, %v272
    %v274 = vpop.f32.mrf.mxu0
    %v275 = vpop.f32.mrf.mxu0
    %276 = vdwg.mxu0
    %v277 = vrsqrt.pop %v271
    %v278 = vmul.f32 %v271, %v277
    %vm279 = vcmp.eq.f32.partialorder %v271, inf
    %v280 = vsel %vm279, %v271, %v278
    %vm281 = vcmp.eq.f32.partialorder %v271, 0.0
    %v282 = vand.u32 %v271, 2147483648
    %v283 = vsel %vm281, %v282, %v280
    %v284 = vrsqrt.pop %v273
    %v285 = vmul.f32 %v273, %v284
    %vm286 = vcmp.eq.f32.partialorder %v273, inf
    %v287 = vsel %vm286, %v273, %v285
    %vm288 = vcmp.eq.f32.partialorder %v273, 0.0
    %v289 = vand.u32 %v273, 2147483648
    %v290 = vsel %vm288, %v289, %v287
    %v291 = vrsqrt.pop %v283
    %v292 = vmul.f32 %v283, %v291
    %vm293 = vcmp.eq.f32.partialorder %v283, inf
    %v294 = vsel %vm293, %v283, %v292
    %vm295 = vcmp.eq.f32.partialorder %v283, 0.0
    %v296 = vand.u32 %v283, 2147483648
    %v297 = vsel %vm295, %v296, %v294
    %v298 = vrsqrt.pop %v290
    %v299 = vmul.f32 %v290, %v298
    %vm300 = vcmp.eq.f32.partialorder %v290, inf
    %v301 = vsel %vm300, %v290, %v299
    %vm302 = vcmp.eq.f32.partialorder %v290, 0.0
    %v303 = vand.u32 %v290, 2147483648
    %v304 = vsel %vm302, %v303, %v301
    %v305 = vadd.f32 %v297, 1e-06
    %v306 = vadd.f32 %v304, 1e-06
    %v307 = vrcp.pop %v305
    %v308 = vrcp.pop %v306
    %v309 = vmul.f32 %v40, %v307
    %v310 = vmul.f32 %v41, %v308
    %311 = vst [vmem:[#allocation7] sm:$0xff] %v309
    %312 = vst [vmem:[#allocation7 + $0x8] sm:$0xff] %v310
    // Predicated region
    $region18: #{tpu_custom_call.1} parent=1 // pred_check
      _
    $region19: #{tpu_custom_call.1} parent=1 // pred_check_branch
      %314 = sbr.rel (0) target = $region21
    $region20: #{tpu_custom_call.1} parent=1 // pred_region
      %s316 = ssub.s32 256, 256
      %317 = vsyncadd [#allocation4], %s316
      %s319 = sshll.u32 [#allocation7], 4
      %s320 = int_to_ptr.vmem [resolvable:$true] %s319
      %322 = dma.vmem_to_hbm [thread:$0]  %s320, 256, %s2, [#allocation4]
    $region21: #{tpu_custom_call.1} parent=1 // pred_fallthru
      _
    // Predicated region
    $region22: #{tpu_custom_call.1} parent=1 // pred_check
      _
    $region23: #{tpu_custom_call.1} parent=1 // pred_check_branch
      %324 = sbr.rel (0) target = $region25
    $region24: #{tpu_custom_call.1} parent=1 // pred_region
      %325 = dma.done [#allocation4], 256
    $region25: #{tpu_custom_call.1} parent=1 // pred_fallthru
      _
    %326 = vsyncpa [#allocation3], 1
    %327 = vsyncpa [#allocation6], 1
    %328 = vsyncpa [#allocation4], 1

</llo_original>
